<compile_context>
chip_gen: v7x
topology: tpu7x:2x2x1
jax: 0.10.0
libtpu: 0.0.40
codegen_flags: <defaults>
</compile_context>

<pallas_src>
import math

import jax
import jax.numpy as jnp
from jax.experimental import pallas as pl
from jax.experimental.pallas import tpu as pltpu


def _round_up(x, m):
    return ((x + m - 1) // m) * m


# ---------------------------------------------------------------------------
# Kernels (all matmuls are canonical (M,K)x(K,N): bf16 operands, f32 accum)
# ---------------------------------------------------------------------------
def _collapsed_kernel(x_ref, w1_ref, b1_ref, w2_ref, mask_ref, o_ref):
    # x is delivered as f32 and cast to bf16 in-kernel (saves an XLA cast pass).
    xb = x_ref[...].astype(jnp.bfloat16)
    h = jnp.dot(xb, w1_ref[...], preferred_element_type=jnp.float32)
    # h kept in bf16 before the 2nd MXU pass (matches the bf16 reference;
    # keep f32 here if exact f32-module parity is ever required).
    h = jnp.maximum(h + b1_ref[...], 0.0).astype(jnp.bfloat16)
    out = jnp.dot(h, w2_ref[...], preferred_element_type=jnp.float32)
    o_ref[...] = (out + mask_ref[...]).astype(o_ref.dtype)


def _fused2d_kernel(x_ref, w1_ref, b1_ref, w2_ref, mask_ref, o_ref, h_ref):
    # h = relu(x @ W1 + b1): once per batch tile, reused for every out_feat tile.
    @pl.when(pl.program_id(1) == 0)
    def _():
        xb = x_ref[...].astype(jnp.bfloat16)
        h = jnp.dot(xb, w1_ref[...], preferred_element_type=jnp.float32)
        h_ref[...] = jnp.maximum(h + b1_ref[...], 0.0).astype(h_ref.dtype)

    out = jnp.dot(h_ref[...], w2_ref[...], preferred_element_type=jnp.float32)
    o_ref[...] = (out + mask_ref[...]).astype(o_ref.dtype)


def _hext2d_kernel(h_ref, w2_ref, mask_ref, o_ref):
    out = jnp.dot(h_ref[...], w2_ref[...], preferred_element_type=jnp.float32)
    o_ref[...] = (out + mask_ref[...]).astype(o_ref.dtype)


# ---------------------------------------------------------------------------
# One-time preparation: cached/preprocessed operands + tiling/mode decision
# ---------------------------------------------------------------------------
def prepare_mlp_mask(weight1, bias1, weight2, mask,
                     out_channel, out_height, out_width, out_choices,
                     bias2=None, *, batch_size, tm=256, tn=512,
                     out_dtype=jnp.float32, vmem_budget_bytes=None):
    hidden_dim = int(weight1.shape[0])
    in_n_feat = int(weight1.shape[1])
    out_feat = out_channel * out_height * out_width * out_choices
    assert weight2.shape == (out_feat, hidden_dim)

    # ---- generation-dependent VMEM budget ----------------------------------
    try:
        cap = int(getattr(pltpu.get_tpu_info(), "vmem_capacity_bytes", 0)) \
            or 64 * 1024 * 1024
    except Exception:
        cap = 64 * 1024 * 1024
    if vmem_budget_bytes is None:
        vmem_budget_bytes = int(0.72 * cap)     # ~92 MiB v5e/v6e, ~46 MiB v7x
    budget = int(vmem_budget_bytes)

    BF, F32 = 2, 4
    tm_eff = _round_up(min(tm, _round_up(max(batch_size, 1), 16)), 16)
    n_pad128 = _round_up(out_feat, 128)         # lane-dense output columns

    # Resident (constant-index, Buffered(1)) operands are counted ONCE.
    def est_collapsed(tm_):
        return (2 * tm_ * in_n_feat * F32        # x tile (f32, double-buffered)
                + in_n_feat * hidden_dim * BF    # W1 (resident)
                + hidden_dim * F32               # b1 (resident)
                + hidden_dim * n_pad128 * BF     # W2 full (resident)
                + n_pad128 * F32                 # mask full (resident)
                + 2 * tm_ * n_pad128 * F32       # out tile (double-buffered)
                + 2 * tm_ * hidden_dim * F32)    # h temporaries

    def est_2d(tm_, tn_, fused):
        e = (2 * tn_ * hidden_dim * BF           # W2 tile (double-buffered)
             + 2 * tn_ * F32                     # mask tile
             + 2 * tm_ * tn_ * F32)              # out tile
        if fused:
            e += (2 * tm_ * in_n_feat * F32      # x tile
                  + in_n_feat * hidden_dim * BF  # W1 (resident)
                  + hidden_dim * F32             # b1 (resident)
                  + tm_ * hidden_dim * BF        # h scratch
                  + tm_ * hidden_dim * F32)      # h temporaries
        else:
            e += 2 * tm_ * hidden_dim * BF       # h tile (precomputed by XLA)
        return e

    # ---- mode selection -----------------------------------------------------
    tm_c = tm_eff
    while est_collapsed(tm_c) > budget and tm_c > 16:
        tm_c = max(16, _round_up(tm_c // 2, 16))

    if est_collapsed(tm_c) <= budget:
        # W2 + one output row-slab fit: read W2 from HBM exactly once per call.
        mode, tm_eff, tn_eff = "collapsed", tm_c, n_pad128
    else:
        grid_m = _round_up(max(batch_size, 1), tm_eff) // tm_eff
        w1_bytes = in_n_feat * hidden_dim * BF
        # grid_m == 1 would pin all work on one v7x TensorCore (carried h
        # scratch forces "arbitrary" j); computing h in XLA lets j be
        # "parallel".  Also used whenever W1 cannot stay resident.
        fused = (grid_m > 1) and (w1_bytes <= budget // 2)
        tm_2 = tm_eff
        tn_2 = _round_up(min(tn, n_pad128), 128)
        while est_2d(tm_2, tn_2, fused) > budget and tn_2 > 128:
            tn_2 = max(128, _round_up(tn_2 // 2, 128))
        while est_2d(tm_2, tn_2, fused) > budget and tm_2 > 16:
            tm_2 = max(16, _round_up(tm_2 // 2, 16))
        if fused and est_2d(tm_2, tn_2, True) > budget:
            fused = False                        # fall back to XLA-computed h
            tn_2 = _round_up(min(tn, n_pad128), 128)
            while est_2d(tm_2, tn_2, False) > budget and tn_2 > 128:
                tn_2 = max(128, _round_up(tn_2 // 2, 128))
            while est_2d(tm_2, tn_2, False) > budget and tm_2 > 16:
                tm_2 = max(16, _round_up(tm_2 // 2, 16))
        mode, tm_eff, tn_eff = ("fused2d" if fused else "hext2d"), tm_2, tn_2

    n_pad = _round_up(out_feat, tn_eff)
    est = (est_collapsed(tm_eff) if mode == "collapsed"
           else est_2d(tm_eff, tn_eff, mode == "fused2d"))
    vmem_limit = min(int(0.95 * cap), max(32 * 1024 * 1024, int(1.3 * est)))

    # ---- one-time operand preprocessing (cached; no per-call HBM passes) ----
    w1t = jnp.asarray(weight1, jnp.float32).T.astype(jnp.bfloat16)   # (in, hidden)
    b1r = jnp.asarray(bias1, jnp.float32).reshape(1, hidden_dim)
    w2t = jnp.asarray(weight2, jnp.float32).T.astype(jnp.bfloat16)   # (hidden, out)
    if n_pad != out_feat:
        w2t = jnp.pad(w2t, ((0, 0), (0, n_pad - out_feat)))

    # Static (1,1,1,1,K) or learned (1,oc,oh,ow,K) mask -> (1, n_pad) f32 row.
    mask_full = jnp.broadcast_to(
        jnp.asarray(mask, jnp.float32),
        (1, out_channel, out_height, out_width, out_choices)).reshape(1, out_feat)
    if bias2 is not None:
        mask_full = mask_full + jnp.asarray(bias2, jnp.float32).reshape(1, out_feat)
    if n_pad != out_feat:
        mask_full = jnp.pad(mask_full, ((0, 0), (0, n_pad - out_feat)))

    jax.block_until_ready((w1t, b1r, w2t, mask_full))

    return dict(mode=mode, tm=tm_eff, tn=tn_eff, n_pad=n_pad,
                in_n_feat=in_n_feat, hidden_dim=hidden_dim, out_feat=out_feat,
                out_channel=out_channel, out_height=out_height,
                out_width=out_width, out_choices=out_choices,
                out_dtype=out_dtype, vmem_limit=int(vmem_limit),
                w1t=w1t, b1=b1r, w2t=w2t, mask=mask_full)


# ---------------------------------------------------------------------------
# Forward
# ---------------------------------------------------------------------------
def mlp_mask_forward(x, cfg):
    """x: (B, C_in, H_in, W_in) f32.  Returns (B, C_out, H_out, W_out, K)."""
    mode = cfg["mode"]
    tm, tn, n_pad = cfg["tm"], cfg["tn"], cfg["n_pad"]
    in_n_feat, hidden = cfg["in_n_feat"], cfg["hidden_dim"]
    out_feat = cfg["out_feat"]
    w1t, b1, w2t, mask = cfg["w1t"], cfg["b1"], cfg["w2t"], cfg["mask"]

    B = x.shape[0]
    x2d = x.reshape(B, in_n_feat).astype(jnp.float32)   # bf16 cast happens in-kernel
    b_pad = _round_up(B, tm)
    grid_m = b_pad // tm
    flops = 2 * b_pad * hidden * (in_n_feat + n_pad)

    def run(buffered):
        def res(shape, index_map):
            # Resident operand: constant index map -> single buffer.
            if buffered:
                return pl.BlockSpec(shape, index_map, pipeline_mode=pl.Buffered(1))
            return pl.BlockSpec(shape, index_map)

        if mode == "collapsed":
            xp = jnp.pad(x2d, ((0, b_pad - B), (0, 0))) if b_pad != B else x2d
            bytes_acc = int(xp.size * 4 + w1t.size * 2 + b1.size * 4
                            + w2t.size * 2 + mask.size * 4 + b_pad * n_pad * 4)
            return pl.pallas_call(
                _collapsed_kernel,
                out_shape=jax.ShapeDtypeStruct((b_pad, n_pad), cfg["out_dtype"]),
                grid=(grid_m,),
                in_specs=[
                    pl.BlockSpec((tm, in_n_feat), lambda i: (i, 0)),   # x tile
                    res((in_n_feat, hidden), lambda i: (0, 0)),        # W1 (resident)
                    res((1, hidden), lambda i: (0, 0)),                # b1
                    res((hidden, n_pad), lambda i: (0, 0)),            # W2 full
                    res((1, n_pad), lambda i: (0, 0)),                 # mask (+b2)
                ],
                out_specs=pl.BlockSpec((tm, n_pad), lambda i: (i, 0)),
                compiler_params=pltpu.CompilerParams(
                    dimension_semantics=("parallel",),
                    vmem_limit_bytes=cfg["vmem_limit"]),
                cost_estimate=pl.CostEstimate(flops=flops, transcendentals=0,
                                              bytes_accessed=bytes_acc),
            )(xp, w1t, b1, w2t, mask)

        grid_n = n_pad // tn

        if mode == "fused2d":
            xp = jnp.pad(x2d, ((0, b_pad - B), (0, 0))) if b_pad != B else x2d
            bytes_acc = int(xp.size * 4 + w1t.size * 2 + b1.size * 4
                            + w2t.size * 2 * grid_m + mask.size * 4 * grid_m
                            + b_pad * n_pad * 4)
            return pl.pallas_call(
                _fused2d_kernel,
                out_shape=jax.ShapeDtypeStruct((b_pad, n_pad), cfg["out_dtype"]),
                grid=(grid_m, grid_n),
                in_specs=[
                    pl.BlockSpec((tm, in_n_feat), lambda i, j: (i, 0)),  # x tile
                    res((in_n_feat, hidden), lambda i, j: (0, 0)),       # W1 (resident)
                    res((1, hidden), lambda i, j: (0, 0)),               # b1
                    pl.BlockSpec((hidden, tn), lambda i, j: (0, j)),     # W2 tile
                    pl.BlockSpec((1, tn), lambda i, j: (0, j)),          # mask tile
                ],
                out_specs=pl.BlockSpec((tm, tn), lambda i, j: (i, j)),
                scratch_shapes=[pltpu.VMEM((tm, hidden), jnp.bfloat16)],  # h
                compiler_params=pltpu.CompilerParams(
                    dimension_semantics=("parallel", "arbitrary"),
                    vmem_limit_bytes=cfg["vmem_limit"]),
                cost_estimate=pl.CostEstimate(flops=flops, transcendentals=0,
                                              bytes_accessed=bytes_acc),
            )(xp, w1t, b1, w2t, mask)

        # mode == "hext2d": h from XLA (tiny matmul); kernel = matmul + mask,
        # both grid axes independent -> "parallel" (uses both v7x TensorCores).
        h = jnp.maximum(
            jnp.dot(x2d.astype(jnp.bfloat16), w1t,
                    preferred_element_type=jnp.float32) + b1, 0.0)
        h = h.astype(jnp.bfloat16)
        if b_pad != B:
            h = jnp.pad(h, ((0, b_pad - B), (0, 0)))
        bytes_acc = int(h.size * 2 + w2t.size * 2 * grid_m
                        + mask.size * 4 * grid_m + b_pad * n_pad * 4)
        return pl.pallas_call(
            _hext2d_kernel,
            out_shape=jax.ShapeDtypeStruct((b_pad, n_pad), cfg["out_dtype"]),
            grid=(grid_m, grid_n),
            in_specs=[
                pl.BlockSpec((tm, hidden), lambda i, j: (i, 0)),     # h tile
                pl.BlockSpec((hidden, tn), lambda i, j: (0, j)),     # W2 tile
                pl.BlockSpec((1, tn), lambda i, j: (0, j)),          # mask tile
            ],
            out_specs=pl.BlockSpec((tm, tn), lambda i, j: (i, j)),
            compiler_params=pltpu.CompilerParams(
                dimension_semantics=("parallel", "parallel"),
                vmem_limit_bytes=cfg["vmem_limit"]),
            cost_estimate=pl.CostEstimate(flops=2 * b_pad * hidden * n_pad,
                                          transcendentals=0,
                                          bytes_accessed=bytes_acc),
        )(h, w2t, mask)

    try:
        out2d = run(buffered=True)
    except Exception:
        # Fallback if pipeline_mode=pl.Buffered(1) is unsupported in this build.
        out2d = run(buffered=False)

    out2d = out2d[:B, :out_feat]
    return out2d.reshape(B, cfg["out_channel"], cfg["out_height"],
                         cfg["out_width"], cfg["out_choices"])


# ---------------------------------------------------------------------------
# Test harness
# ---------------------------------------------------------------------------
def _xavier_normal(key, shape, gain=1.0):
    fan_out, fan_in = shape  # torch Linear-style weight (out, in)
    std = gain * math.sqrt(2.0 / (fan_in + fan_out))
    return std * jax.random.normal(key, shape, dtype=jnp.float32)


def _make_case(key, B, in_c, in_h, in_w, oc, oh, ow, k, init_weights_cfg,
               init_std=0.01, bias=False, learn_static=True):
    in_n_feat = in_c * in_h * in_w
    out_n_feat = oc * oh * ow
    hidden = 2 ** (3 * k)
    kx, kw1, kw2, km = jax.random.split(key, 4)
    weight1 = _xavier_normal(kw1, (hidden, in_n_feat))
    weight2 = _xavier_normal(kw2, (out_n_feat * k, hidden), gain=1e-4)
    bias1 = jnp.zeros((hidden,), jnp.float32)
    bias2 = jnp.zeros((out_n_feat * k,), jnp.float32) if bias else None
    mshape = (1, oc, oh, ow, k) if learn_static else (1, 1, 1, 1, k)
    mask_noise = init_std * jax.random.normal(km, mshape, dtype=jnp.float32)
    mask_means = jnp.asarray([init_weights_cfg[i] * k for i in range(k)],
                             dtype=jnp.float32)
    mask = mask_noise + mask_means
    x = jax.random.normal(kx, (B, in_c, in_h, in_w), dtype=jnp.float32)
    return x, weight1, bias1, weight2, bias2, mask


def _ref_f32(x, w1, b1, w2, b2, mask, oc, oh, ow, k):
    B = x.shape[0]
    h = jnp.maximum(x.reshape(B, -1) @ w1.T + b1, 0.0)
    out = h @ w2.T
    if b2 is not None:
        out = out + b2
    return out.reshape(B, oc, oh, ow, k) + mask


def _ref_bf16(x, w1, b1, w2, b2, mask, oc, oh, ow, k):
    B = x.shape[0]
    xb = x.reshape(B, -1).astype(jnp.bfloat16)
    h = jnp.maximum(jnp.dot(xb, w1.T.astype(jnp.bfloat16),
                            preferred_element_type=jnp.float32) + b1, 0.0)
    out = jnp.dot(h.astype(jnp.bfloat16), w2.T.astype(jnp.bfloat16),
                  preferred_element_type=jnp.float32)
    if b2 is not None:
        out = out + b2
    return out.reshape(B, oc, oh, ow, k) + mask


def _check(out, x, w1, b1, w2, b2, mask, oc, oh, ow, k):
    assert out.shape == (x.shape[0], oc, oh, ow, k)
    ref_b = _ref_bf16(x, w1, b1, w2, b2, mask, oc, oh, ow, k)
    ref_f = _ref_f32(x, w1, b1, w2, b2, mask, oc, oh, ow, k)
    assert jnp.allclose(out, ref_b, atol=2e-4, rtol=2e-4), "bf16-ref mismatch"
    assert jnp.allclose(out, ref_f, atol=2e-2, rtol=2e-2), "f32-ref mismatch"


if __name__ == "__main__":
    key = jax.random.PRNGKey(0)
    k1, k2, k3 = jax.random.split(key, 3)

    # --- Case 1: module defaults, small shapes -> "collapsed" mode ----------
    oc, oh, ow, K = 4, 4, 4, 2
    x, w1, b1, w2, b2, mask = _make_case(k1, B=2, in_c=4, in_h=8, in_w=8,
                                         oc=oc, oh=oh, ow=ow, k=K,
                                         init_weights_cfg=[0.1, 0.2])
    cfg = prepare_mlp_mask(w1, b1, w2, mask, oc, oh, ow, K, bias2=b2,
                           batch_size=x.shape[0])
    assert cfg["mode"] == "collapsed", cfg["mode"]
    out = jax.block_until_ready(mlp_mask_forward(x, cfg))
    _check(out, x, w1, b1, w2, b2, mask, oc, oh, ow, K)

    # --- Case 2: bigger B + tight budget -> "fused2d" (h scratch, 2-D grid) --
    oc2, oh2, ow2 = 8, 8, 8
    x, w1, b1, w2, b2, mask = _make_case(k2, B=32, in_c=4, in_h=8, in_w=8,
                                         oc=oc2, oh=oh2, ow=ow2, k=K,
                                         init_weights_cfg=[0.1, 0.2],
                                         bias=True, learn_static=False)
    cfg = prepare_mlp_mask(w1, b1, w2, mask, oc2, oh2, ow2, K, bias2=b2,
                           batch_size=x.shape[0], tm=16,
                           vmem_budget_bytes=192 * 1024)
    assert cfg["mode"] == "fused2d", cfg["mode"]
    out = jax.block_until_ready(mlp_mask_forward(x, cfg))
    _check(out, x, w1, b1, w2, b2, mask, oc2, oh2, ow2, K)

    # --- Case 3: small B + tight budget -> "hext2d" (h via XLA, parallel j) --
    x, w1, b1, w2, b2, mask = _make_case(k3, B=2, in_c=4, in_h=8, in_w=8,
                                         oc=oc2, oh=oh2, ow=ow2, k=K,
                                         init_weights_cfg=[0.1, 0.2])
    cfg = prepare_mlp_mask(w1, b1, w2, mask, oc2, oh2, ow2, K, bias2=b2,
                           batch_size=x.shape[0],
                           vmem_budget_bytes=192 * 1024)
    assert cfg["mode"] == "hext2d", cfg["mode"]
    out = jax.block_until_ready(mlp_mask_forward(x, cfg))
    _check(out, x, w1, b1, w2, b2, mask, oc2, oh2, ow2, K)

    print("KERNEL_OK")
</pallas_src>

<mosaic_0001>
module attributes {stable_mosaic.version = 11 : i64} {
  func.func @_collapsed_kernel(%arg0: i32, %arg1: memref<16x256xf32, #tpu.memory_space<vmem>>, %arg2: memref<256x64xbf16, #tpu.memory_space<vmem>>, %arg3: memref<1x64xf32, #tpu.memory_space<vmem>>, %arg4: memref<64x128xbf16, #tpu.memory_space<vmem>>, %arg5: memref<1x128xf32, #tpu.memory_space<vmem>>, %arg6: memref<16x128xf32, #tpu.memory_space<vmem>>) attributes {dimension_semantics = [#tpu.dimension_semantics<parallel>], iteration_bounds = array<i64: 1>, scalar_prefetch = 0 : i64, scratch_operands = 0 : i64, tpu.core_type = #tpu.core_type<tc>, window_params = [{transform_indices = @transform_0, window_bounds = array<i64: 16, 256>}, {pipeline_mode = #tpu.pipeline_mode<synchronous>, transform_indices = @transform_1, window_bounds = array<i64: 256, 64>}, {pipeline_mode = #tpu.pipeline_mode<synchronous>, transform_indices = @transform_2, window_bounds = array<i64: 1, 64>}, {pipeline_mode = #tpu.pipeline_mode<synchronous>, transform_indices = @transform_3, window_bounds = array<i64: 64, 128>}, {pipeline_mode = #tpu.pipeline_mode<synchronous>, transform_indices = @transform_4, window_bounds = array<i64: 1, 128>}, {transform_indices = @transform_5, window_bounds = array<i64: 16, 128>}]} {
    %c0 = arith.constant 0 : index
    %c0_0 = arith.constant 0 : index
    %0 = vector.load %arg1[%c0, %c0_0] : memref<16x256xf32, #tpu.memory_space<vmem>>, vector<16x256xf32>
    %1 = arith.truncf %0 : vector<16x256xf32> to vector<16x256xbf16>
    %c0_1 = arith.constant 0 : index
    %c0_2 = arith.constant 0 : index
    %2 = vector.load %arg2[%c0_1, %c0_2] : memref<256x64xbf16, #tpu.memory_space<vmem>>, vector<256x64xbf16>
    %cst = arith.constant dense<0.000000e+00> : vector<16x64xf32>
    %3 = tpu.matmul %1, %2, %cst {dimension_numbers = #tpu.dot_dimension_numbers<[1], [0], [0], [1], [0, 0, 1, 1], [], []>} : vector<16x256xbf16>, vector<256x64xbf16>, vector<16x64xf32> -> vector<16x64xf32>
    %c0_3 = arith.constant 0 : index
    %c0_4 = arith.constant 0 : index
    %4 = vector.load %arg3[%c0_3, %c0_4] : memref<1x64xf32, #tpu.memory_space<vmem>>, vector<1x64xf32>
    %5 = vector.broadcast %4 : vector<1x64xf32> to vector<16x64xf32>
    %6 = arith.addf %3, %5 : vector<16x64xf32>
    %cst_5 = arith.constant 0.000000e+00 : f32
    %7 = vector.broadcast %cst_5 : f32 to vector<16x64xf32>
    %8 = arith.maximumf %6, %7 : vector<16x64xf32>
    %9 = arith.truncf %8 : vector<16x64xf32> to vector<16x64xbf16>
    %c0_6 = arith.constant 0 : index
    %c0_7 = arith.constant 0 : index
    %10 = vector.load %arg4[%c0_6, %c0_7] : memref<64x128xbf16, #tpu.memory_space<vmem>>, vector<64x128xbf16>
    %cst_8 = arith.constant dense<0.000000e+00> : vector<16x128xf32>
    %11 = tpu.matmul %9, %10, %cst_8 {dimension_numbers = #tpu.dot_dimension_numbers<[1], [0], [0], [1], [0, 0, 1, 1], [], []>} : vector<16x64xbf16>, vector<64x128xbf16>, vector<16x128xf32> -> vector<16x128xf32>
    %c0_9 = arith.constant 0 : index
    %c0_10 = arith.constant 0 : index
    %12 = vector.load %arg5[%c0_9, %c0_10] : memref<1x128xf32, #tpu.memory_space<vmem>>, vector<1x128xf32>
    %13 = vector.broadcast %12 : vector<1x128xf32> to vector<16x128xf32>
    %14 = arith.addf %11, %13 : vector<16x128xf32>
    %c0_11 = arith.constant 0 : index
    %c0_12 = arith.constant 0 : index
    %15 = vector.load %arg6[%c0_11, %c0_12] : memref<16x128xf32, #tpu.memory_space<vmem>>, vector<16x128xf32>
    tpu.vector_store %arg6[%c0_11, %c0_12], %14 {strides = array<i32>} : memref<16x128xf32, #tpu.memory_space<vmem>>, vector<16x128xf32>,
    return
  }
  func.func @transform_0(%arg0: i32) -> (i32, i32) {
    %c0_i32 = arith.constant 0 : i32
    %c0_i32_0 = arith.constant 0 : i32
    return %arg0, %c0_i32 : i32, i32
  }
  func.func @transform_1(%arg0: i32) -> (i32, i32) {
    %c0_i32 = arith.constant 0 : i32
    %c0_i32_0 = arith.constant 0 : i32
    %c0_i32_1 = arith.constant 0 : i32
    return %c0_i32, %c0_i32_0 : i32, i32
  }
  func.func @transform_2(%arg0: i32) -> (i32, i32) {
    %c0_i32 = arith.constant 0 : i32
    %c0_i32_0 = arith.constant 0 : i32
    %c0_i32_1 = arith.constant 0 : i32
    return %c0_i32, %c0_i32_0 : i32, i32
  }
  func.func @transform_3(%arg0: i32) -> (i32, i32) {
    %c0_i32 = arith.constant 0 : i32
    %c0_i32_0 = arith.constant 0 : i32
    %c0_i32_1 = arith.constant 0 : i32
    return %c0_i32, %c0_i32_0 : i32, i32
  }
  func.func @transform_4(%arg0: i32) -> (i32, i32) {
    %c0_i32 = arith.constant 0 : i32
    %c0_i32_0 = arith.constant 0 : i32
    %c0_i32_1 = arith.constant 0 : i32
    return %c0_i32, %c0_i32_0 : i32, i32
  }
  func.func @transform_5(%arg0: i32) -> (i32, i32) {
    %c0_i32 = arith.constant 0 : i32
    %c0_i32_0 = arith.constant 0 : i32
    return %arg0, %c0_i32 : i32, i32
  }
}

module attributes {stable_mosaic.version = 11 : i64} {
  func.func @_collapsed_kernel(%arg0: i32, %arg1: memref<16x256xf32, #tpu.memory_space<vmem>>, %arg2: memref<256x64xbf16, #tpu.memory_space<vmem>>, %arg3: memref<1x64xf32, #tpu.memory_space<vmem>>, %arg4: memref<64x128xbf16, #tpu.memory_space<vmem>>, %arg5: memref<1x128xf32, #tpu.memory_space<vmem>>, %arg6: memref<16x128xf32, #tpu.memory_space<vmem>>) attributes {dimension_semantics = [#tpu.dimension_semantics<parallel>], iteration_bounds = array<i64: 1>, scalar_prefetch = 0 : i64, scratch_operands = 0 : i64, tpu.core_type = #tpu.core_type<tc>, window_params = [{transform_indices = @transform_0, window_bounds = array<i64: 16, 256>}, {pipeline_mode = #tpu.pipeline_mode<synchronous>, transform_indices = @transform_1, window_bounds = array<i64: 256, 64>}, {pipeline_mode = #tpu.pipeline_mode<synchronous>, transform_indices = @transform_2, window_bounds = array<i64: 1, 64>}, {pipeline_mode = #tpu.pipeline_mode<synchronous>, transform_indices = @transform_3, window_bounds = array<i64: 64, 128>}, {pipeline_mode = #tpu.pipeline_mode<synchronous>, transform_indices = @transform_4, window_bounds = array<i64: 1, 128>}, {transform_indices = @transform_5, window_bounds = array<i64: 16, 128>}]} {
    %c0 = arith.constant 0 : index
    %c0_0 = arith.constant 0 : index
    %0 = vector.load %arg1[%c0, %c0_0] : memref<16x256xf32, #tpu.memory_space<vmem>>, vector<16x256xf32>
    %1 = arith.truncf %0 : vector<16x256xf32> to vector<16x256xbf16>
    %c0_1 = arith.constant 0 : index
    %c0_2 = arith.constant 0 : index
    %2 = vector.load %arg2[%c0_1, %c0_2] : memref<256x64xbf16, #tpu.memory_space<vmem>>, vector<256x64xbf16>
    %cst = arith.constant dense<0.000000e+00> : vector<16x64xf32>
    %3 = tpu.matmul %1, %2, %cst {dimension_numbers = #tpu.dot_dimension_numbers<[1], [0], [0], [1], [0, 0, 1, 1], [], []>} : vector<16x256xbf16>, vector<256x64xbf16>, vector<16x64xf32> -> vector<16x64xf32>
    %c0_3 = arith.constant 0 : index
    %c0_4 = arith.constant 0 : index
    %4 = vector.load %arg3[%c0_3, %c0_4] : memref<1x64xf32, #tpu.memory_space<vmem>>, vector<1x64xf32>
    %5 = vector.broadcast %4 : vector<1x64xf32> to vector<16x64xf32>
    %6 = arith.addf %3, %5 : vector<16x64xf32>
    %cst_5 = arith.constant 0.000000e+00 : f32
    %7 = vector.broadcast %cst_5 : f32 to vector<16x64xf32>
    %8 = arith.maximumf %6, %7 : vector<16x64xf32>
    %9 = arith.truncf %8 : vector<16x64xf32> to vector<16x64xbf16>
    %c0_6 = arith.constant 0 : index
    %c0_7 = arith.constant 0 : index
    %10 = vector.load %arg4[%c0_6, %c0_7] : memref<64x128xbf16, #tpu.memory_space<vmem>>, vector<64x128xbf16>
    %cst_8 = arith.constant dense<0.000000e+00> : vector<16x128xf32>
    %11 = tpu.matmul %9, %10, %cst_8 {dimension_numbers = #tpu.dot_dimension_numbers<[1], [0], [0], [1], [0, 0, 1, 1], [], []>} : vector<16x64xbf16>, vector<64x128xbf16>, vector<16x128xf32> -> vector<16x128xf32>
    %c0_9 = arith.constant 0 : index
    %c0_10 = arith.constant 0 : index
    %12 = vector.load %arg5[%c0_9, %c0_10] : memref<1x128xf32, #tpu.memory_space<vmem>>, vector<1x128xf32>
    %13 = vector.broadcast %12 : vector<1x128xf32> to vector<16x128xf32>
    %14 = arith.addf %11, %13 : vector<16x128xf32>
    %c0_11 = arith.constant 0 : index
    %c0_12 = arith.constant 0 : index
    %15 = vector.load %arg6[%c0_11, %c0_12] : memref<16x128xf32, #tpu.memory_space<vmem>>, vector<16x128xf32>
    tpu.vector_store %arg6[%c0_11, %c0_12], %14 {strides = array<i32>} : memref<16x128xf32, #tpu.memory_space<vmem>>, vector<16x128xf32>,
    return
  }
  func.func @transform_0(%arg0: i32) -> (i32, i32) {
    %c0_i32 = arith.constant 0 : i32
    %c0_i32_0 = arith.constant 0 : i32
    return %arg0, %c0_i32 : i32, i32
  }
  func.func @transform_1(%arg0: i32) -> (i32, i32) {
    %c0_i32 = arith.constant 0 : i32
    %c0_i32_0 = arith.constant 0 : i32
    %c0_i32_1 = arith.constant 0 : i32
    return %c0_i32, %c0_i32_0 : i32, i32
  }
  func.func @transform_2(%arg0: i32) -> (i32, i32) {
    %c0_i32 = arith.constant 0 : i32
    %c0_i32_0 = arith.constant 0 : i32
    %c0_i32_1 = arith.constant 0 : i32
    return %c0_i32, %c0_i32_0 : i32, i32
  }
  func.func @transform_3(%arg0: i32) -> (i32, i32) {
    %c0_i32 = arith.constant 0 : i32
    %c0_i32_0 = arith.constant 0 : i32
    %c0_i32_1 = arith.constant 0 : i32
    return %c0_i32, %c0_i32_0 : i32, i32
  }
  func.func @transform_4(%arg0: i32) -> (i32, i32) {
    %c0_i32 = arith.constant 0 : i32
    %c0_i32_0 = arith.constant 0 : i32
    %c0_i32_1 = arith.constant 0 : i32
    return %c0_i32, %c0_i32_0 : i32, i32
  }
  func.func @transform_5(%arg0: i32) -> (i32, i32) {
    %c0_i32 = arith.constant 0 : i32
    %c0_i32_0 = arith.constant 0 : i32
    return %arg0, %c0_i32 : i32, i32
  }
}

</mosaic_0001>

<llo_original>
// kernel: tpu_custom_call.1
$region0: #{tpu_custom_call.1}
  #allocation0 [shape = 'u32[]', space=smem, size = 0x4, offset = 0x4, fixed_abs, tag = 'smem constant byte address 0x4 - core index']
  #allocation1 [shape = 'u32[144,128]{1,0:T(1,128)}', space=vmem, size = 0x12000, scoped, tag = 'internal scratch']
  %s0 = inlined_call_operand.vmem [shape: f32[16,256], index: 0, kind: input, shape index: {}]
  %s1 = inlined_call_operand.vmem [shape: bf16[256,64], index: 1, kind: input, shape index: {}]
  %s2 = inlined_call_operand.vmem [shape: f32[1,64], index: 2, kind: input, shape index: {}]
  %s3 = inlined_call_operand.vmem [shape: bf16[64,128], index: 3, kind: input, shape index: {}]
  %s4 = inlined_call_operand.vmem [shape: f32[1,128], index: 4, kind: input, shape index: {}]
  %s5 = inlined_call_operand.hbm [shape: f32[16,128], index: 5, kind: output, shape index: {}]
  %s6 = sld [smem:[#allocation0]]
  $region30: #{tpu_custom_call.1} parent=0
    _
  %s8 = ssub.s32 1, %s6
  %s9 = scalar_select 0, %s8, %s6
  $region1: #{tpu_custom_call.1} parent=0
    #allocation2 [shape = 'u8[8192]{0}', space=vmem, size = 0x2000, scoped, tag = 'output window, operand 0, single buffered']
    #allocation3 [shape = 's32[1]{0}', space=sflag, size = 0x4, scoped, tag = 'scoped memory for tpu_custom_call.1']
    %10 = vsyncpa [#allocation3], 0
    // Predicated region
    $region2: #{tpu_custom_call.1} parent=1 // pred_check
      _
    $region3: #{tpu_custom_call.1} parent=1 // pred_check_branch
      %12 = sbr.rel (0) target = $region5
    $region4: #{tpu_custom_call.1} parent=1 // pred_region
      _
    $region5: #{tpu_custom_call.1} parent=1 // pred_fallthru
      _
    // Predicated region
    $region6: #{tpu_custom_call.1} parent=1 // pred_check
      _
    $region7: #{tpu_custom_call.1} parent=1 // pred_check_branch
      %14 = sbr.rel (0) target = $region9
    $region8: #{tpu_custom_call.1} parent=1 // pred_region
      _
    $region9: #{tpu_custom_call.1} parent=1 // pred_fallthru
      _
    // Predicated region
    $region10: #{tpu_custom_call.1} parent=1 // pred_check
      _
    $region11: #{tpu_custom_call.1} parent=1 // pred_check_branch
      %16 = sbr.rel (0) target = $region13
    $region12: #{tpu_custom_call.1} parent=1 // pred_region
      _
    $region13: #{tpu_custom_call.1} parent=1 // pred_fallthru
      _
    // Predicated region
    $region14: #{tpu_custom_call.1} parent=1 // pred_check
      _
    $region15: #{tpu_custom_call.1} parent=1 // pred_check_branch
      %18 = sbr.rel (0) target = $region17
    $region16: #{tpu_custom_call.1} parent=1 // pred_region
      _
    $region17: #{tpu_custom_call.1} parent=1 // pred_fallthru
      _
    // Predicated region
    $region18: #{tpu_custom_call.1} parent=1 // pred_check
      _
    $region19: #{tpu_custom_call.1} parent=1 // pred_check_branch
      %20 = sbr.rel (0) target = $region21
    $region20: #{tpu_custom_call.1} parent=1 // pred_region
      _
    $region21: #{tpu_custom_call.1} parent=1 // pred_fallthru
      _
    %v22 = vld [vmem:[%s0] sm:$0xff]
    %v23 = vld [vmem:[%s0 + $0x8] sm:$0xff]
    %v24 = vld [vmem:[%s0 + $0x10] sm:$0xff]
    %v25 = vld [vmem:[%s0 + $0x18] sm:$0xff]
    %v26 = vpack.c.bf16 %v24, %v22
    %v27 = vpack.c.bf16 %v25, %v23
    %v28 = vld [vmem:[%s1] sm:$0xf]
    %v29 = vld [vmem:[%s1 + $0x4] sm:$0xf]
    %v30 = vld [vmem:[%s1 + $0x8] sm:$0xf]
    %v31 = vld [vmem:[%s1 + $0xc] sm:$0xf]
    %v32 = vld [vmem:[%s1 + $0x10] sm:$0xf]
    %v33 = vld [vmem:[%s1 + $0x14] sm:$0xf]
    %v34 = vld [vmem:[%s1 + $0x18] sm:$0xf]
    %v35 = vld [vmem:[%s1 + $0x1c] sm:$0xf]
    %v36 = vld [vmem:[%s1 + $0x20] sm:$0xf]
    %v37 = vld [vmem:[%s1 + $0x24] sm:$0xf]
    %v38 = vld [vmem:[%s1 + $0x28] sm:$0xf]
    %v39 = vld [vmem:[%s1 + $0x2c] sm:$0xf]
    %v40 = vld [vmem:[%s1 + $0x30] sm:$0xf]
    %v41 = vld [vmem:[%s1 + $0x34] sm:$0xf]
    %v42 = vld [vmem:[%s1 + $0x38] sm:$0xf]
    %v43 = vld [vmem:[%s1 + $0x3c] sm:$0xf]
    %v44 = vld [vmem:[%s1 + $0x40] sm:$0xf]
    %v45 = vld [vmem:[%s1 + $0x44] sm:$0xf]
    %v46 = vld [vmem:[%s1 + $0x48] sm:$0xf]
    %v47 = vld [vmem:[%s1 + $0x4c] sm:$0xf]
    %v48 = vld [vmem:[%s1 + $0x50] sm:$0xf]
    %v49 = vld [vmem:[%s1 + $0x54] sm:$0xf]
    %v50 = vld [vmem:[%s1 + $0x58] sm:$0xf]
    %v51 = vld [vmem:[%s1 + $0x5c] sm:$0xf]
    %v52 = vld [vmem:[%s1 + $0x60] sm:$0xf]
    %v53 = vld [vmem:[%s1 + $0x64] sm:$0xf]
    %v54 = vld [vmem:[%s1 + $0x68] sm:$0xf]
    %v55 = vld [vmem:[%s1 + $0x6c] sm:$0xf]
    %v56 = vld [vmem:[%s1 + $0x70] sm:$0xf]
    %v57 = vld [vmem:[%s1 + $0x74] sm:$0xf]
    %v58 = vld [vmem:[%s1 + $0x78] sm:$0xf]
    %v59 = vld [vmem:[%s1 + $0x7c] sm:$0xf]
    %v60 = vld [vmem:[%s2] sm:$0x1]
    %v62 = vlaneseq
    %v63 = vshrl.u32 %v62, 7
    %v64 = vsub.s32 0, %v63
    %v65 = vrot.slane %v60, %v64
    %v99 = vunpack.c.l.b16 %v28
    %v100 = vunpack.c.l.b16 %v29
    %v101 = vunpack.c.l.b16 %v30
    %v102 = vunpack.c.l.b16 %v31
    %v103 = vunpack.c.l.b16 %v32
    %v104 = vunpack.c.l.b16 %v33
    %v105 = vunpack.c.l.b16 %v34
    %v106 = vunpack.c.l.b16 %v35
    %v107 = vunpack.c.l.b16 %v36
    %v108 = vunpack.c.l.b16 %v37
    %v109 = vunpack.c.l.b16 %v38
    %v110 = vunpack.c.l.b16 %v39
    %v111 = vunpack.c.l.b16 %v40
    %v112 = vunpack.c.l.b16 %v41
    %v113 = vunpack.c.l.b16 %v42
    %v114 = vunpack.c.l.b16 %v43
    %v115 = vunpack.c.l.b16 %v44
    %v116 = vunpack.c.l.b16 %v45
    %v117 = vunpack.c.l.b16 %v46
    %v118 = vunpack.c.l.b16 %v47
    %v119 = vunpack.c.l.b16 %v48
    %v120 = vunpack.c.l.b16 %v49
    %v121 = vunpack.c.l.b16 %v50
    %v122 = vunpack.c.l.b16 %v51
    %v123 = vunpack.c.l.b16 %v52
    %v124 = vunpack.c.l.b16 %v53
    %v125 = vunpack.c.l.b16 %v54
    %v126 = vunpack.c.l.b16 %v55
    %v127 = vunpack.c.l.b16 %v56
    %v128 = vunpack.c.l.b16 %v57
    %v129 = vunpack.c.l.b16 %v58
    %v130 = vunpack.c.l.b16 %v59
    %v131 = vpack.c.b16 %v100, %v99
    %v132 = vpack.c.b16 %v102, %v101
    %v133 = vpack.c.b16 %v104, %v103
    %v134 = vpack.c.b16 %v106, %v105
    %v135 = vpack.c.b16 %v108, %v107
    %v136 = vpack.c.b16 %v110, %v109
    %v137 = vpack.c.b16 %v112, %v111
    %v138 = vpack.c.b16 %v114, %v113
    %v139 = vpack.c.b16 %v116, %v115
    %v140 = vpack.c.b16 %v118, %v117
    %v141 = vpack.c.b16 %v120, %v119
    %v142 = vpack.c.b16 %v122, %v121
    %v143 = vpack.c.b16 %v124, %v123
    %v144 = vpack.c.b16 %v126, %v125
    %v145 = vpack.c.b16 %v128, %v127
    %v146 = vpack.c.b16 %v130, %v129
    %163 = vmatprep.subr.bf16.mxu0 0
    %164 = vmatpush1.bf16.msra.mxu0 %v131
    %165 = vmatprep.subr.bf16.mxu0 0
    %166 = vmatpush1.bf16.msra.mxu0 %v132
    %167 = vmatprep.subr.bf16.mxu0 0
    %168 = vmatpush1.bf16.msra.mxu0 %v133
    %169 = vmatprep.subr.bf16.mxu0 0
    %170 = vmatpush1.bf16.msra.mxu0 %v134
    %171 = vmatprep.subr.bf16.mxu0 0
    %172 = vmatpush1.bf16.msra.mxu0 %v135
    %173 = vmatprep.subr.bf16.mxu0 0
    %174 = vmatpush1.bf16.msra.mxu0 %v136
    %175 = vmatprep.subr.bf16.mxu0 0
    %176 = vmatpush1.bf16.msra.mxu0 %v137
    %177 = vmatprep.subr.bf16.mxu0 0
    %178 = vmatpush1.bf16.msra.mxu0 %v138
    %179 = vmatprep.subr.bf16.mxu0 0
    %180 = vmatpush1.bf16.msra.mxu0 %v139
    %181 = vmatprep.subr.bf16.mxu0 0
    %182 = vmatpush1.bf16.msra.mxu0 %v140
    %183 = vmatprep.subr.bf16.mxu0 0
    %184 = vmatpush1.bf16.msra.mxu0 %v141
    %185 = vmatprep.subr.bf16.mxu0 0
    %186 = vmatpush1.bf16.msra.mxu0 %v142
    %187 = vmatprep.subr.bf16.mxu0 0
    %188 = vmatpush1.bf16.msra.mxu0 %v143
    %189 = vmatprep.subr.bf16.mxu0 0
    %190 = vmatpush1.bf16.msra.mxu0 %v144
    %191 = vmatprep.subr.bf16.mxu0 0
    %192 = vmatpush1.bf16.msra.mxu0 %v145
    %193 = vmatprep.subr.bf16.mxu0 0
    %194 = vmatpush1.bf16.msra.mxu0 %v146
    %195 = vmatprep.mubr.bf16.mxu0 %v27
    %196 = vmatmul.mubr.bf16.gmra.mrb[0].mxu0 %v26
    %v197 = vpop.f32.mrb[0].mxu0
    %v198 = vadd.f32 %v65, %v197
    %v199 = vpop.f32.mrb[0].mxu0
    %v200 = vpop.f32.mrb[0].mxu0
    %v201 = vadd.f32 %v65, %v200
    %v202 = vpop.f32.mrb[0].mxu0
    %203 = vdwg.mxu0
    %v204 = vmax.f32 %v198, 0.0
    %v205 = vmax.f32 %v201, 0.0
    %v206 = vpack.c.bf16 %v205, %v204
    %v207 = vld [vmem:[%s3] sm:$0xf]
    %v208 = vld [vmem:[%s3 + $0x4] sm:$0xf]
    %v209 = vld [vmem:[%s3 + $0x8] sm:$0xf]
    %v210 = vld [vmem:[%s3 + $0xc] sm:$0xf]
    %v211 = vld [vmem:[%s3 + $0x10] sm:$0xf]
    %v212 = vld [vmem:[%s3 + $0x14] sm:$0xf]
    %v213 = vld [vmem:[%s3 + $0x18] sm:$0xf]
    %v214 = vld [vmem:[%s3 + $0x1c] sm:$0xf]
    %v215 = vld [vmem:[%s4] sm:$0x1]
    %v217 = vlaneseq
    %v218 = vshrl.u32 %v217, 7
    %v219 = vsub.s32 0, %v218
    %v220 = vrot.slane %v215, %v219
    %v230 = vunpack.c.l.b16 %v207
    %v231 = vunpack.c.l.b16 %v208
    %v232 = vunpack.c.l.b16 %v209
    %v233 = vunpack.c.l.b16 %v210
    %v234 = vunpack.c.l.b16 %v211
    %v235 = vunpack.c.l.b16 %v212
    %v236 = vunpack.c.l.b16 %v213
    %v237 = vunpack.c.l.b16 %v214
    %v238 = vpack.c.b16 %v231, %v230
    %v239 = vpack.c.b16 %v233, %v232
    %v240 = vpack.c.b16 %v235, %v234
    %v241 = vpack.c.b16 %v237, %v236
    %vm246 = vcmask 523264
    %v248 = vsel %vm246, %v206, 0
    %250 = vmatprep.subr.bf16.mxu0 0
    %251 = vmatpush1.bf16.msra.mxu0 %v238
    %252 = vmatprep.subr.bf16.mxu0 0
    %253 = vmatpush1.bf16.msra.mxu0 %v239
    %254 = vmatprep.subr.bf16.mxu0 0
    %255 = vmatpush1.bf16.msra.mxu0 %v240
    %256 = vmatprep.subr.bf16.mxu0 0
    %257 = vmatpush1.bf16.msra.mxu0 %v241
    %258 = vmatprep.subr.bf16.mxu0 0
    %259 = vmatpush1.bf16.msra.mxu0 0
    %260 = vmatprep.subr.bf16.mxu0 0
    %261 = vmatpush1.bf16.msra.mxu0 0
    %262 = vmatprep.subr.bf16.mxu0 0
    %263 = vmatpush1.bf16.msra.mxu0 0
    %264 = vmatprep.subr.bf16.mxu0 0
    %265 = vmatpush1.bf16.msra.mxu0 0
    %266 = vmatprep.subr.bf16.mxu0 0
    %267 = vmatpush1.bf16.msra.mxu0 0
    %268 = vmatprep.subr.bf16.mxu0 0
    %269 = vmatpush1.bf16.msra.mxu0 0
    %270 = vmatprep.subr.bf16.mxu0 0
    %271 = vmatpush1.bf16.msra.mxu0 0
    %272 = vmatprep.subr.bf16.mxu0 0
    %273 = vmatpush1.bf16.msra.mxu0 0
    %274 = vmatprep.subr.bf16.mxu0 0
    %275 = vmatpush1.bf16.msra.mxu0 0
    %276 = vmatprep.subr.bf16.mxu0 0
    %277 = vmatpush1.bf16.msra.mxu0 0
    %278 = vmatprep.subr.bf16.mxu0 0
    %279 = vmatpush1.bf16.msra.mxu0 0
    %280 = vmatprep.subr.bf16.mxu0 0
    %281 = vmatpush1.bf16.msra.mxu0 0
    %282 = vmatprep.mubr.bf16.mxu0 0
    %283 = vmatmul.mubr.bf16.gmra.mrb[0].mxu0 %v248
    %v284 = vpop.f32.mrb[0].mxu0
    %v285 = vadd.f32 %v220, %v284
    %v286 = vpop.f32.mrb[0].mxu0
    %v287 = vpop.f32.mrb[0].mxu0
    %v288 = vadd.f32 %v220, %v287
    %v289 = vpop.f32.mrb[0].mxu0
    %290 = vdwg.mxu0
    %291 = vst [vmem:[#allocation2] sm:$0xff] %v285
    %292 = vst [vmem:[#allocation2 + $0x8] sm:$0xff] %v288
    // Predicated region
    $region22: #{tpu_custom_call.1} parent=1 // pred_check
      _
    $region23: #{tpu_custom_call.1} parent=1 // pred_check_branch
      %294 = sbr.rel (0) target = $region25
    $region24: #{tpu_custom_call.1} parent=1 // pred_region
      %s296 = ssub.s32 256, 256
      %297 = vsyncadd [#allocation3], %s296
      %s298 = sshll.u32 [#allocation2], 4
      %s299 = int_to_ptr.vmem [resolvable:$true] %s298
      %304 = dma.vmem_to_hbm [thread:$0]  %s299, 256, %s5, [#allocation3], 128, 128, 8
    $region25: #{tpu_custom_call.1} parent=1 // pred_fallthru
      _
    // Predicated region
    $region26: #{tpu_custom_call.1} parent=1 // pred_check
      _
    $region27: #{tpu_custom_call.1} parent=1 // pred_check_branch
      %306 = sbr.rel (0) target = $region29
    $region28: #{tpu_custom_call.1} parent=1 // pred_region
      %307 = dma.done [#allocation3], 256
    $region29: #{tpu_custom_call.1} parent=1 // pred_fallthru
      _
    %308 = vsyncpa [#allocation3], 1

// kernel: tpu_custom_call.1
$region0: #{tpu_custom_call.1}
  #allocation0 [shape = 'u32[]', space=smem, size = 0x4, offset = 0x4, fixed_abs, tag = 'smem constant byte address 0x4 - core index']
  #allocation1 [shape = 'u32[144,128]{1,0:T(1,128)}', space=vmem, size = 0x12000, scoped, tag = 'internal scratch']
  %s0 = inlined_call_operand.vmem [shape: f32[16,256], index: 0, kind: input, shape index: {}]
  %s1 = inlined_call_operand.vmem [shape: bf16[256,64], index: 1, kind: input, shape index: {}]
  %s2 = inlined_call_operand.vmem [shape: f32[1,64], index: 2, kind: input, shape index: {}]
  %s3 = inlined_call_operand.vmem [shape: bf16[64,128], index: 3, kind: input, shape index: {}]
  %s4 = inlined_call_operand.vmem [shape: f32[1,128], index: 4, kind: input, shape index: {}]
  %s5 = inlined_call_operand.hbm [shape: f32[16,128], index: 5, kind: output, shape index: {}]
  %s6 = sld [smem:[#allocation0]]
  $region30: #{tpu_custom_call.1} parent=0
    _
  %s8 = ssub.s32 1, %s6
  %s9 = scalar_select 0, %s8, %s6
  $region1: #{tpu_custom_call.1} parent=0
    #allocation2 [shape = 'u8[8192]{0}', space=vmem, size = 0x2000, scoped, tag = 'output window, operand 0, single buffered']
    #allocation3 [shape = 's32[1]{0}', space=sflag, size = 0x4, scoped, tag = 'scoped memory for tpu_custom_call.1']
    %10 = vsyncpa [#allocation3], 0
    // Predicated region
    $region2: #{tpu_custom_call.1} parent=1 // pred_check
      _
    $region3: #{tpu_custom_call.1} parent=1 // pred_check_branch
      %12 = sbr.rel (0) target = $region5
    $region4: #{tpu_custom_call.1} parent=1 // pred_region
      _
    $region5: #{tpu_custom_call.1} parent=1 // pred_fallthru
      _
    // Predicated region
    $region6: #{tpu_custom_call.1} parent=1 // pred_check
      _
    $region7: #{tpu_custom_call.1} parent=1 // pred_check_branch
      %14 = sbr.rel (0) target = $region9
    $region8: #{tpu_custom_call.1} parent=1 // pred_region
      _
    $region9: #{tpu_custom_call.1} parent=1 // pred_fallthru
      _
    // Predicated region
    $region10: #{tpu_custom_call.1} parent=1 // pred_check
      _
    $region11: #{tpu_custom_call.1} parent=1 // pred_check_branch
      %16 = sbr.rel (0) target = $region13
    $region12: #{tpu_custom_call.1} parent=1 // pred_region
      _
    $region13: #{tpu_custom_call.1} parent=1 // pred_fallthru
      _
    // Predicated region
    $region14: #{tpu_custom_call.1} parent=1 // pred_check
      _
    $region15: #{tpu_custom_call.1} parent=1 // pred_check_branch
      %18 = sbr.rel (0) target = $region17
    $region16: #{tpu_custom_call.1} parent=1 // pred_region
      _
    $region17: #{tpu_custom_call.1} parent=1 // pred_fallthru
      _
    // Predicated region
    $region18: #{tpu_custom_call.1} parent=1 // pred_check
      _
    $region19: #{tpu_custom_call.1} parent=1 // pred_check_branch
      %20 = sbr.rel (0) target = $region21
    $region20: #{tpu_custom_call.1} parent=1 // pred_region
      _
    $region21: #{tpu_custom_call.1} parent=1 // pred_fallthru
      _
    %v22 = vld [vmem:[%s0] sm:$0xff]
    %v23 = vld [vmem:[%s0 + $0x8] sm:$0xff]
    %v24 = vld [vmem:[%s0 + $0x10] sm:$0xff]
    %v25 = vld [vmem:[%s0 + $0x18] sm:$0xff]
    %v26 = vpack.c.bf16 %v24, %v22
    %v27 = vpack.c.bf16 %v25, %v23
    %v28 = vld [vmem:[%s1] sm:$0xf]
    %v29 = vld [vmem:[%s1 + $0x4] sm:$0xf]
    %v30 = vld [vmem:[%s1 + $0x8] sm:$0xf]
    %v31 = vld [vmem:[%s1 + $0xc] sm:$0xf]
    %v32 = vld [vmem:[%s1 + $0x10] sm:$0xf]
    %v33 = vld [vmem:[%s1 + $0x14] sm:$0xf]
    %v34 = vld [vmem:[%s1 + $0x18] sm:$0xf]
    %v35 = vld [vmem:[%s1 + $0x1c] sm:$0xf]
    %v36 = vld [vmem:[%s1 + $0x20] sm:$0xf]
    %v37 = vld [vmem:[%s1 + $0x24] sm:$0xf]
    %v38 = vld [vmem:[%s1 + $0x28] sm:$0xf]
    %v39 = vld [vmem:[%s1 + $0x2c] sm:$0xf]
    %v40 = vld [vmem:[%s1 + $0x30] sm:$0xf]
    %v41 = vld [vmem:[%s1 + $0x34] sm:$0xf]
    %v42 = vld [vmem:[%s1 + $0x38] sm:$0xf]
    %v43 = vld [vmem:[%s1 + $0x3c] sm:$0xf]
    %v44 = vld [vmem:[%s1 + $0x40] sm:$0xf]
    %v45 = vld [vmem:[%s1 + $0x44] sm:$0xf]
    %v46 = vld [vmem:[%s1 + $0x48] sm:$0xf]
    %v47 = vld [vmem:[%s1 + $0x4c] sm:$0xf]
    %v48 = vld [vmem:[%s1 + $0x50] sm:$0xf]
    %v49 = vld [vmem:[%s1 + $0x54] sm:$0xf]
    %v50 = vld [vmem:[%s1 + $0x58] sm:$0xf]
    %v51 = vld [vmem:[%s1 + $0x5c] sm:$0xf]
    %v52 = vld [vmem:[%s1 + $0x60] sm:$0xf]
    %v53 = vld [vmem:[%s1 + $0x64] sm:$0xf]
    %v54 = vld [vmem:[%s1 + $0x68] sm:$0xf]
    %v55 = vld [vmem:[%s1 + $0x6c] sm:$0xf]
    %v56 = vld [vmem:[%s1 + $0x70] sm:$0xf]
    %v57 = vld [vmem:[%s1 + $0x74] sm:$0xf]
    %v58 = vld [vmem:[%s1 + $0x78] sm:$0xf]
    %v59 = vld [vmem:[%s1 + $0x7c] sm:$0xf]
    %v60 = vld [vmem:[%s2] sm:$0x1]
    %v62 = vlaneseq
    %v63 = vshrl.u32 %v62, 7
    %v64 = vsub.s32 0, %v63
    %v65 = vrot.slane %v60, %v64
    %v99 = vunpack.c.l.b16 %v28
    %v100 = vunpack.c.l.b16 %v29
    %v101 = vunpack.c.l.b16 %v30
    %v102 = vunpack.c.l.b16 %v31
    %v103 = vunpack.c.l.b16 %v32
    %v104 = vunpack.c.l.b16 %v33
    %v105 = vunpack.c.l.b16 %v34
    %v106 = vunpack.c.l.b16 %v35
    %v107 = vunpack.c.l.b16 %v36
    %v108 = vunpack.c.l.b16 %v37
    %v109 = vunpack.c.l.b16 %v38
    %v110 = vunpack.c.l.b16 %v39
    %v111 = vunpack.c.l.b16 %v40
    %v112 = vunpack.c.l.b16 %v41
    %v113 = vunpack.c.l.b16 %v42
    %v114 = vunpack.c.l.b16 %v43
    %v115 = vunpack.c.l.b16 %v44
    %v116 = vunpack.c.l.b16 %v45
    %v117 = vunpack.c.l.b16 %v46
    %v118 = vunpack.c.l.b16 %v47
    %v119 = vunpack.c.l.b16 %v48
    %v120 = vunpack.c.l.b16 %v49
    %v121 = vunpack.c.l.b16 %v50
    %v122 = vunpack.c.l.b16 %v51
    %v123 = vunpack.c.l.b16 %v52
    %v124 = vunpack.c.l.b16 %v53
    %v125 = vunpack.c.l.b16 %v54
    %v126 = vunpack.c.l.b16 %v55
    %v127 = vunpack.c.l.b16 %v56
    %v128 = vunpack.c.l.b16 %v57
    %v129 = vunpack.c.l.b16 %v58
    %v130 = vunpack.c.l.b16 %v59
    %v131 = vpack.c.b16 %v100, %v99
    %v132 = vpack.c.b16 %v102, %v101
    %v133 = vpack.c.b16 %v104, %v103
    %v134 = vpack.c.b16 %v106, %v105
    %v135 = vpack.c.b16 %v108, %v107
    %v136 = vpack.c.b16 %v110, %v109
    %v137 = vpack.c.b16 %v112, %v111
    %v138 = vpack.c.b16 %v114, %v113
    %v139 = vpack.c.b16 %v116, %v115
    %v140 = vpack.c.b16 %v118, %v117
    %v141 = vpack.c.b16 %v120, %v119
    %v142 = vpack.c.b16 %v122, %v121
    %v143 = vpack.c.b16 %v124, %v123
    %v144 = vpack.c.b16 %v126, %v125
    %v145 = vpack.c.b16 %v128, %v127
    %v146 = vpack.c.b16 %v130, %v129
    %163 = vmatprep.subr.bf16.mxu0 0
    %164 = vmatpush1.bf16.msra.mxu0 %v131
    %165 = vmatprep.subr.bf16.mxu0 0
    %166 = vmatpush1.bf16.msra.mxu0 %v132
    %167 = vmatprep.subr.bf16.mxu0 0
    %168 = vmatpush1.bf16.msra.mxu0 %v133
    %169 = vmatprep.subr.bf16.mxu0 0
    %170 = vmatpush1.bf16.msra.mxu0 %v134
    %171 = vmatprep.subr.bf16.mxu0 0
    %172 = vmatpush1.bf16.msra.mxu0 %v135
    %173 = vmatprep.subr.bf16.mxu0 0
    %174 = vmatpush1.bf16.msra.mxu0 %v136
    %175 = vmatprep.subr.bf16.mxu0 0
    %176 = vmatpush1.bf16.msra.mxu0 %v137
    %177 = vmatprep.subr.bf16.mxu0 0
    %178 = vmatpush1.bf16.msra.mxu0 %v138
    %179 = vmatprep.subr.bf16.mxu0 0
    %180 = vmatpush1.bf16.msra.mxu0 %v139
    %181 = vmatprep.subr.bf16.mxu0 0
    %182 = vmatpush1.bf16.msra.mxu0 %v140
    %183 = vmatprep.subr.bf16.mxu0 0
    %184 = vmatpush1.bf16.msra.mxu0 %v141
    %185 = vmatprep.subr.bf16.mxu0 0
    %186 = vmatpush1.bf16.msra.mxu0 %v142
    %187 = vmatprep.subr.bf16.mxu0 0
    %188 = vmatpush1.bf16.msra.mxu0 %v143
    %189 = vmatprep.subr.bf16.mxu0 0
    %190 = vmatpush1.bf16.msra.mxu0 %v144
    %191 = vmatprep.subr.bf16.mxu0 0
    %192 = vmatpush1.bf16.msra.mxu0 %v145
    %193 = vmatprep.subr.bf16.mxu0 0
    %194 = vmatpush1.bf16.msra.mxu0 %v146
    %195 = vmatprep.mubr.bf16.mxu0 %v27
    %196 = vmatmul.mubr.bf16.gmra.mrb[0].mxu0 %v26
    %v197 = vpop.f32.mrb[0].mxu0
    %v198 = vadd.f32 %v65, %v197
    %v199 = vpop.f32.mrb[0].mxu0
    %v200 = vpop.f32.mrb[0].mxu0
    %v201 = vadd.f32 %v65, %v200
    %v202 = vpop.f32.mrb[0].mxu0
    %203 = vdwg.mxu0
    %v204 = vmax.f32 %v198, 0.0
    %v205 = vmax.f32 %v201, 0.0
    %v206 = vpack.c.bf16 %v205, %v204
    %v207 = vld [vmem:[%s3] sm:$0xf]
    %v208 = vld [vmem:[%s3 + $0x4] sm:$0xf]
    %v209 = vld [vmem:[%s3 + $0x8] sm:$0xf]
    %v210 = vld [vmem:[%s3 + $0xc] sm:$0xf]
    %v211 = vld [vmem:[%s3 + $0x10] sm:$0xf]
    %v212 = vld [vmem:[%s3 + $0x14] sm:$0xf]
    %v213 = vld [vmem:[%s3 + $0x18] sm:$0xf]
    %v214 = vld [vmem:[%s3 + $0x1c] sm:$0xf]
    %v215 = vld [vmem:[%s4] sm:$0x1]
    %v217 = vlaneseq
    %v218 = vshrl.u32 %v217, 7
    %v219 = vsub.s32 0, %v218
    %v220 = vrot.slane %v215, %v219
    %v230 = vunpack.c.l.b16 %v207
    %v231 = vunpack.c.l.b16 %v208
    %v232 = vunpack.c.l.b16 %v209
    %v233 = vunpack.c.l.b16 %v210
    %v234 = vunpack.c.l.b16 %v211
    %v235 = vunpack.c.l.b16 %v212
    %v236 = vunpack.c.l.b16 %v213
    %v237 = vunpack.c.l.b16 %v214
    %v238 = vpack.c.b16 %v231, %v230
    %v239 = vpack.c.b16 %v233, %v232
    %v240 = vpack.c.b16 %v235, %v234
    %v241 = vpack.c.b16 %v237, %v236
    %vm246 = vcmask 523264
    %v248 = vsel %vm246, %v206, 0
    %250 = vmatprep.subr.bf16.mxu0 0
    %251 = vmatpush1.bf16.msra.mxu0 %v238
    %252 = vmatprep.subr.bf16.mxu0 0
    %253 = vmatpush1.bf16.msra.mxu0 %v239
    %254 = vmatprep.subr.bf16.mxu0 0
    %255 = vmatpush1.bf16.msra.mxu0 %v240
    %256 = vmatprep.subr.bf16.mxu0 0
    %257 = vmatpush1.bf16.msra.mxu0 %v241
    %258 = vmatprep.subr.bf16.mxu0 0
    %259 = vmatpush1.bf16.msra.mxu0 0
    %260 = vmatprep.subr.bf16.mxu0 0
    %261 = vmatpush1.bf16.msra.mxu0 0
    %262 = vmatprep.subr.bf16.mxu0 0
    %263 = vmatpush1.bf16.msra.mxu0 0
    %264 = vmatprep.subr.bf16.mxu0 0
    %265 = vmatpush1.bf16.msra.mxu0 0
    %266 = vmatprep.subr.bf16.mxu0 0
    %267 = vmatpush1.bf16.msra.mxu0 0
    %268 = vmatprep.subr.bf16.mxu0 0
    %269 = vmatpush1.bf16.msra.mxu0 0
    %270 = vmatprep.subr.bf16.mxu0 0
    %271 = vmatpush1.bf16.msra.mxu0 0
    %272 = vmatprep.subr.bf16.mxu0 0
    %273 = vmatpush1.bf16.msra.mxu0 0
    %274 = vmatprep.subr.bf16.mxu0 0
    %275 = vmatpush1.bf16.msra.mxu0 0
    %276 = vmatprep.subr.bf16.mxu0 0
    %277 = vmatpush1.bf16.msra.mxu0 0
    %278 = vmatprep.subr.bf16.mxu0 0
    %279 = vmatpush1.bf16.msra.mxu0 0
    %280 = vmatprep.subr.bf16.mxu0 0
    %281 = vmatpush1.bf16.msra.mxu0 0
    %282 = vmatprep.mubr.bf16.mxu0 0
    %283 = vmatmul.mubr.bf16.gmra.mrb[0].mxu0 %v248
    %v284 = vpop.f32.mrb[0].mxu0
    %v285 = vadd.f32 %v220, %v284
    %v286 = vpop.f32.mrb[0].mxu0
    %v287 = vpop.f32.mrb[0].mxu0
    %v288 = vadd.f32 %v220, %v287
    %v289 = vpop.f32.mrb[0].mxu0
    %290 = vdwg.mxu0
    %291 = vst [vmem:[#allocation2] sm:$0xff] %v285
    %292 = vst [vmem:[#allocation2 + $0x8] sm:$0xff] %v288
    // Predicated region
    $region22: #{tpu_custom_call.1} parent=1 // pred_check
      _
    $region23: #{tpu_custom_call.1} parent=1 // pred_check_branch
      %294 = sbr.rel (0) target = $region25
    $region24: #{tpu_custom_call.1} parent=1 // pred_region
      %s296 = ssub.s32 256, 256
      %297 = vsyncadd [#allocation3], %s296
      %s298 = sshll.u32 [#allocation2], 4
      %s299 = int_to_ptr.vmem [resolvable:$true] %s298
      %304 = dma.vmem_to_hbm [thread:$0]  %s299, 256, %s5, [#allocation3], 128, 128, 8
    $region25: #{tpu_custom_call.1} parent=1 // pred_fallthru
      _
    // Predicated region
    $region26: #{tpu_custom_call.1} parent=1 // pred_check
      _
    $region27: #{tpu_custom_call.1} parent=1 // pred_check_branch
      %306 = sbr.rel (0) target = $region29
    $region28: #{tpu_custom_call.1} parent=1 // pred_region
      %307 = dma.done [#allocation3], 256
    $region29: #{tpu_custom_call.1} parent=1 // pred_fallthru
      _
    %308 = vsyncpa [#allocation3], 1

</llo_original>
